<compile_context>
chip_gen: v5e
topology: v5e:2x2
jax: 0.10.0
libtpu: 0.0.40
codegen_flags: <defaults>
</compile_context>

<pallas_src>
import functools

import jax
import jax.numpy as jnp
from jax.experimental import pallas as pl
from jax.experimental.pallas import tpu as pltpu


_NEG = -1e30  # pad bias for softmax segments (finite -> avoids inf-inf NaN)


def _round_up(x, m):
    return (x + m - 1) // m * m


# ----------------------------------------------------------------------------
# Kernel 1: input_proj — 1x1 Conv2d(backbone_channels -> hidden_dim)
#   A 1x1 conv in NHWC is a per-pixel matmul over channels.  Spatial flatten is
#   done in the wrapper; rows are padded to a multiple of the tile so the
#   auto-pipeline always double-buffers (no giant single-shot fallback).
# ----------------------------------------------------------------------------
def _input_proj_kernel(x_ref, w_ref, b_ref, o_ref):
    # x_ref: (1, T, Cin) bf16 ; w_ref: (Cin, Coutp) bf16 ; b_ref: (1, Coutp) f32
    y = jnp.dot(x_ref[0], w_ref[...], preferred_element_type=jnp.float32)
    o_ref[0] = y + b_ref[...]


def input_proj_pallas(src, w, b, *, tile_hw=512):
    """src: (B, H, W, Cin) f32; w: (Cin, Cout) f32; b: (1, Cout) f32 -> (B, H, W, Cout) f32."""
    B, H, W, Cin = src.shape
    HW = H * W
    Cout = w.shape[1]
    Coutp = _round_up(Cout, 128)

    # Row tile: multiple of 8; pad HW up to a tile multiple (slice back in wrapper).
    tile = min(tile_hw, _round_up(HW, 8))
    HWp = _round_up(HW, tile)

    x2 = src.reshape(B, HW, Cin)
    if HWp != HW:
        x2 = jnp.pad(x2, ((0, 0), (0, HWp - HW), (0, 0)))
    # bf16 inputs (halves HBM traffic, 2-4x MXU throughput), f32 accumulation.
    x2 = x2.astype(jnp.bfloat16)
    wp = jnp.zeros((Cin, Coutp), jnp.bfloat16).at[:, :Cout].set(w.astype(jnp.bfloat16))
    bp = jnp.zeros((1, Coutp), jnp.float32).at[:, :Cout].set(b.reshape(1, Cout))

    out = pl.pallas_call(
        _input_proj_kernel,
        out_shape=jax.ShapeDtypeStruct((B, HWp, Coutp), jnp.float32),
        grid=(B, HWp // tile),
        in_specs=[
            pl.BlockSpec((1, tile, Cin), lambda bi, ti: (bi, ti, 0)),
            pl.BlockSpec((Cin, Coutp), lambda bi, ti: (0, 0)),
            pl.BlockSpec((1, Coutp), lambda bi, ti: (0, 0)),
        ],
        out_specs=pl.BlockSpec((1, tile, Coutp), lambda bi, ti: (bi, ti, 0)),
        compiler_params=pltpu.CompilerParams(
            dimension_semantics=("parallel", "parallel")),
    )(x2, wp, bp)
    # TODO(synk): write the projected output in bf16 if the downstream transformer
    #             accepts it (halves writeback; biggest relative win on v7x).
    return out[:, :HW, :Cout].reshape(B, H, W, Cout)


# ----------------------------------------------------------------------------
# Kernel 2: DETRMiL heads — one image per grid step, one fused wide matmul
#   x @ [bbox-MLP layer1 | MIL cls | MIL prop | refiner_0..refiner_{d-1}],
#   every segment padded to a 128-lane boundary (softmax segments pad bias -1e30
#   so padded columns contribute exp()->0).  All stores are lane-dense.
# ----------------------------------------------------------------------------
def _detrmil_heads_kernel(x_ref, wf_ref, bf_ref, w2_ref, b2_ref, w3_ref, b3_ref,
                          boxes_ref, final_ref, cls_ref,
                          *, Dp, Cp, Cp1p, depth, n_real):
    Np = x_ref.shape[1]
    x = x_ref[0]                                                  # (Np, D) bf16

    # One wide MXU pass over all heads.
    y = jnp.dot(x, wf_ref[...], preferred_element_type=jnp.float32) + bf_ref[...]

    # ---- bbox_embed MLP (layer 1 already in y), then sigmoid ----
    h = jnp.maximum(y[:, 0:Dp], 0.0).astype(jnp.bfloat16)
    h = jnp.maximum(
        jnp.dot(h, w2_ref[...], preferred_element_type=jnp.float32) + b2_ref[...],
        0.0).astype(jnp.bfloat16)
    boxes = jax.nn.sigmoid(
        jnp.dot(h, w3_ref[...], preferred_element_type=jnp.float32) + b3_ref[...])
    boxes_ref[0] = boxes                                          # (Np, 128)

    # ---- MIL score: softmax over classes * softmax over proposals (exact div) ----
    c_log = y[:, Dp:Dp + Cp]                                      # (Np, Cp)
    p_log = y[:, Dp + Cp:Dp + 2 * Cp]                             # (Np, Cp)
    if Np != n_real:                                              # mask padded proposals
        row = jax.lax.broadcasted_iota(jnp.int32, (Np, Cp), 0)
        p_log = jnp.where(row < n_real, p_log, _NEG)

    c_exp = jnp.exp(c_log - jnp.max(c_log, axis=-1, keepdims=True))
    c_sm = c_exp / jnp.sum(c_exp, axis=-1, keepdims=True)
    p_exp = jnp.exp(p_log - jnp.max(p_log, axis=0, keepdims=True))
    p_sm = p_exp / jnp.sum(p_exp, axis=0, keepdims=True)
    mil = c_sm * p_sm                                             # padded cols -> exactly 0
    cls_ref[...] = jnp.sum(mil, axis=0, keepdims=True).reshape(1, 1, Cp)

    # ---- refinement agents: mean of class softmaxes (static unroll over depth) ----
    base = Dp + 2 * Cp

    def agent(i):
        r = y[:, base + i * Cp1p: base + (i + 1) * Cp1p]
        r_exp = jnp.exp(r - jnp.max(r, axis=-1, keepdims=True))
        return r_exp * pl.reciprocal(jnp.sum(r_exp, axis=-1, keepdims=True),
                                     approx=True)

    acc = agent(0)
    for i in range(1, depth):
        acc = acc + agent(i)
    final_ref[0] = acc * jnp.float32(1.0 / depth)


def prepare_heads_weights(params):
    """Pad / fuse / cast the head weights ONCE (hoisted off the per-call path)."""
    D = params["w1"].shape[0]
    C = params["wc"].shape[1]
    depth, _, Cp1 = params["wr"].shape
    assert Cp1 == C + 1
    Dp, Cp, Cp1p, P4 = _round_up(D, 128), _round_up(C, 128), _round_up(Cp1, 128), 128

    def pad_cols(w, b, width, pad_bias):
        cout = w.shape[-1]
        wpad = jnp.concatenate([w, jnp.zeros((D, width - cout), jnp.float32)], axis=1)
        bpad = jnp.concatenate(
            [b.reshape(1, cout), jnp.full((1, width - cout), pad_bias, jnp.float32)],
            axis=1)
        return wpad, bpad

    # Fused weight: [w1 (pad bias 0) | wc | wp | wr_i ...] (softmax heads pad bias -1e30).
    blocks = [pad_cols(params["w1"], params["b1"], Dp, 0.0),
              pad_cols(params["wc"], params["bc"], Cp, _NEG),
              pad_cols(params["wp"], params["bp"], Cp, _NEG)]
    for i in range(depth):
        blocks.append(pad_cols(params["wr"][i], params["br"][i], Cp1p, _NEG))
    wf = jnp.concatenate([w for w, _ in blocks], axis=1).astype(jnp.bfloat16)  # (D, TOT)
    bf = jnp.concatenate([b for _, b in blocks], axis=1)                       # (1, TOT)

    # Remaining bbox-MLP layers, zero-padded to lane-dense shapes.
    w2p = jnp.zeros((Dp, Dp), jnp.float32).at[:D, :D].set(
        params["w2"]).astype(jnp.bfloat16)
    b2p = jnp.zeros((1, Dp), jnp.float32).at[:, :D].set(params["b2"].reshape(1, D))
    w3p = jnp.zeros((Dp, P4), jnp.float32).at[:D, :4].set(
        params["w3"]).astype(jnp.bfloat16)
    b3p = jnp.zeros((1, P4), jnp.float32).at[:, :4].set(params["b3"].reshape(1, 4))

    return dict(wf=wf, bf=bf, w2p=w2p, b2p=b2p, w3p=w3p, b3p=b3p,
                D=D, C=C, Cp1=Cp1, depth=depth, Dp=Dp, Cp=Cp, Cp1p=Cp1p, P4=P4)


def detrmil_heads_pallas(hs, hw):
    """hs: (B, N, D) f32; hw = prepare_heads_weights(params).
    -> pred_boxes (B,N,4), final_score (B,N,C), cls_logits (B,C)."""
    B, N, D = hs.shape
    assert D == hw["D"]
    Dp, Cp, Cp1p, P4 = hw["Dp"], hw["Cp"], hw["Cp1p"], hw["P4"]
    depth, C, Cp1 = hw["depth"], hw["C"], hw["Cp1"]

    Np = _round_up(N, 8)   # layout-free in-kernel views / stores
    x = hs
    if Np != N:
        x = jnp.pad(x, ((0, 0), (0, Np - N), (0, 0)))
    x = x.astype(jnp.bfloat16)

    wf, bf = hw["wf"], hw["bf"]
    w2p, b2p, w3p, b3p = hw["w2p"], hw["b2p"], hw["w3p"], hw["b3p"]

    kernel = functools.partial(_detrmil_heads_kernel, Dp=Dp, Cp=Cp, Cp1p=Cp1p,
                               depth=depth, n_real=N)

    boxes_p, final_p, cls_p = pl.pallas_call(
        kernel,
        out_shape=(
            jax.ShapeDtypeStruct((B, Np, P4), jnp.float32),
            jax.ShapeDtypeStruct((B, Np, Cp1p), jnp.float32),
            jax.ShapeDtypeStruct((B, 1, Cp), jnp.float32),
        ),
        # One image per step: hs DMA-in / output writeback double-buffer against the
        # softmax+matmul compute, per-step VMEM is tiny, and both v7x TCs get work.
        # TODO(synk): on v6e, block a few images per step when N < 256 to fill the MXU.
        grid=(B,),
        in_specs=[
            pl.BlockSpec((1, Np, D), lambda b: (b, 0, 0)),
            pl.BlockSpec(wf.shape, lambda b: (0, 0)),
            pl.BlockSpec(bf.shape, lambda b: (0, 0)),
            pl.BlockSpec(w2p.shape, lambda b: (0, 0)),
            pl.BlockSpec(b2p.shape, lambda b: (0, 0)),
            pl.BlockSpec(w3p.shape, lambda b: (0, 0)),
            pl.BlockSpec(b3p.shape, lambda b: (0, 0)),
        ],
        out_specs=(
            pl.BlockSpec((1, Np, P4), lambda b: (b, 0, 0)),
            pl.BlockSpec((1, Np, Cp1p), lambda b: (b, 0, 0)),
            pl.BlockSpec((1, 1, Cp), lambda b: (b, 0, 0)),
        ),
        compiler_params=pltpu.CompilerParams(dimension_semantics=("parallel",)),
    )(x, wf, bf, w2p, b2p, w3p, b3p)

    # De-padding and the background-column drop are free XLA views in the wrapper.
    pred_boxes = boxes_p[:, :N, :4]
    final_score = final_p[:, :N, 1:Cp1]
    cls_logits = cls_p[:, 0, :C]
    return pred_boxes, final_score, cls_logits


# ----------------------------------------------------------------------------
# Deterministic parameter construction (shapes follow DETRMiL.__init__).
# Linear weights are stored as (in, out), i.e. already transposed vs torch.
# ----------------------------------------------------------------------------
def make_params(key, *, backbone_channels, hidden_dim, num_classes, refiner_depth):
    ks = jax.random.split(key, 16)
    s = 0.02
    return {
        # input_proj 1x1 conv
        "wproj": s * jax.random.normal(ks[0], (backbone_channels, hidden_dim), jnp.float32),
        "bproj": jnp.zeros((1, hidden_dim), jnp.float32),
        # bbox_embed MLP(hidden, hidden, 4, num_layers=3)
        "w1": s * jax.random.normal(ks[1], (hidden_dim, hidden_dim), jnp.float32),
        "b1": jnp.zeros((1, hidden_dim), jnp.float32),
        "w2": s * jax.random.normal(ks[2], (hidden_dim, hidden_dim), jnp.float32),
        "b2": jnp.zeros((1, hidden_dim), jnp.float32),
        "w3": s * jax.random.normal(ks[3], (hidden_dim, 4), jnp.float32),
        "b3": jnp.zeros((1, 4), jnp.float32),
        # MIL: normal(std=0.01), bias 0
        "wc": 0.01 * jax.random.normal(ks[4], (hidden_dim, num_classes), jnp.float32),
        "bc": jnp.zeros((1, num_classes), jnp.float32),
        "wp": 0.01 * jax.random.normal(ks[5], (hidden_dim, num_classes), jnp.float32),
        "bp": jnp.zeros((1, num_classes), jnp.float32),
        # RefinementAgents: refiner_depth x Linear(hidden, num_classes + 1)
        "wr": 0.01 * jax.random.normal(
            ks[6], (refiner_depth, hidden_dim, num_classes + 1), jnp.float32),
        "br": jnp.zeros((refiner_depth, 1, num_classes + 1), jnp.float32),
    }


if __name__ == "__main__":
    # Small deterministic shapes.
    B = 2                 # batch
    Cin = 4               # backbone.num_channels
    H = W = 16            # feature map spatial size
    N = 8                 # num_queries
    D = 32                # transformer.d_model (hidden_dim)
    NUM_CLASSES = 4
    REFINER_DEPTH = 3

    key = jax.random.PRNGKey(0)
    k_src, k_hs, k_par = jax.random.split(key, 3)

    params = make_params(
        k_par,
        backbone_channels=Cin,
        hidden_dim=D,
        num_classes=NUM_CLASSES,
        refiner_depth=REFINER_DEPTH,
    )
    heads_w = prepare_heads_weights(params)   # precomputed once, off the per-call path

    # Backbone feature map (NHWC) fed into input_proj.
    src = jax.random.normal(k_src, (B, H, W, Cin), jnp.float32)
    proj = input_proj_pallas(src, params["wproj"], params["bproj"])   # (B, H, W, D)

    # Transformer output hs (B, N, D) — transformer is an external module (see TODO above).
    hs = jax.random.normal(k_hs, (B, N, D), jnp.float32)

    pred_boxes, final_score, cls_logits = detrmil_heads_pallas(hs, heads_w)

    out = {
        "pred_logits": final_score,   # refiner final_score[:, :, 1:]  -> (B, N, num_classes)
        "pred_boxes": pred_boxes,     # sigmoid(bbox_embed(hs))        -> (B, N, 4)
        "cls_logits": cls_logits,     # mil_score.sum(dim=1)           -> (B, num_classes)
        "input_proj": proj,           # 1x1 conv output                -> (B, H, W, D)
    }
    jax.block_until_ready(out)

    # Sanity checks against a plain-JAX reference with matched bf16 matmul operands.
    def ref_heads(x, p):
        bf = jnp.bfloat16

        def mm(a, w):
            return jnp.dot(a.astype(bf), w.astype(bf),
                           preferred_element_type=jnp.float32)

        h = jax.nn.relu(mm(x, p["w1"]) + p["b1"][0])
        h = jax.nn.relu(mm(h, p["w2"]) + p["b2"][0])
        boxes = jax.nn.sigmoid(mm(h, p["w3"]) + p["b3"][0])
        c = mm(x, p["wc"]) + p["bc"][0]
        d = mm(x, p["wp"]) + p["bp"][0]
        mil = jax.nn.softmax(c, axis=2) * jax.nn.softmax(d, axis=1)
        cls = mil.sum(axis=1)
        refs = [jax.nn.softmax(mm(x, p["wr"][i]) + p["br"][i][0], axis=2)
                for i in range(p["wr"].shape[0])]
        fin = sum(refs) / len(refs)
        return boxes, fin[:, :, 1:], cls

    rb, rf, rc = ref_heads(hs, params)
    assert jnp.allclose(pred_boxes, rb, atol=2e-3), "pred_boxes mismatch"
    # refinement agents use pl.reciprocal(approx=True) -> slightly looser tolerance
    assert jnp.allclose(final_score, rf, atol=5e-3), "final_score mismatch"
    assert jnp.allclose(cls_logits, rc, atol=2e-3), "cls_logits mismatch"

    # input_proj reference (bf16 inputs, f32 accumulation — same as the kernel).
    src_b = src.astype(jnp.bfloat16).astype(jnp.float32)
    w_b = params["wproj"].astype(jnp.bfloat16).astype(jnp.float32)
    rproj = src_b.reshape(B, H * W, Cin) @ w_b + params["bproj"][0]
    assert jnp.allclose(proj, rproj.reshape(B, H, W, D), atol=1e-4), "input_proj mismatch"

    print("KERNEL_OK")
</pallas_src>

<mosaic_0001>
module attributes {stable_mosaic.version = 11 : i64} {
  func.func @_input_proj_kernel(%arg0: i32, %arg1: i32, %arg2: memref<1x256x4xbf16, #tpu.memory_space<vmem>>, %arg3: memref<4x128xbf16, #tpu.memory_space<vmem>>, %arg4: memref<1x128xf32, #tpu.memory_space<vmem>>, %arg5: memref<1x256x128xf32, #tpu.memory_space<vmem>>) attributes {dimension_semantics = [#tpu.dimension_semantics<parallel>, #tpu.dimension_semantics<parallel>], iteration_bounds = array<i64: 2, 1>, scalar_prefetch = 0 : i64, scratch_operands = 0 : i64, tpu.core_type = #tpu.core_type<tc>, window_params = [{transform_indices = @transform_0, window_bounds = array<i64: 1, 256, 4>}, {pipeline_mode = #tpu.pipeline_mode<synchronous>, transform_indices = @transform_1, window_bounds = array<i64: 4, 128>}, {pipeline_mode = #tpu.pipeline_mode<synchronous>, transform_indices = @transform_2, window_bounds = array<i64: 1, 128>}, {transform_indices = @transform_3, window_bounds = array<i64: 1, 256, 128>}]} {
    %c0 = arith.constant 0 : index
    %c0_0 = arith.constant 0 : index
    %c0_1 = arith.constant 0 : index
    %0 = vector.load %arg2[%c0, %c0_0, %c0_1] : memref<1x256x4xbf16, #tpu.memory_space<vmem>>, vector<1x256x4xbf16>
    %1 = vector.shape_cast %0 : vector<1x256x4xbf16> to vector<256x4xbf16>
    %c0_2 = arith.constant 0 : index
    %c0_3 = arith.constant 0 : index
    %2 = vector.load %arg3[%c0_2, %c0_3] : memref<4x128xbf16, #tpu.memory_space<vmem>>, vector<4x128xbf16>
    %cst = arith.constant dense<0.000000e+00> : vector<256x128xf32>
    %3 = tpu.matmul %1, %2, %cst {dimension_numbers = #tpu.dot_dimension_numbers<[1], [0], [0], [1], [0, 0, 1, 1], [], []>} : vector<256x4xbf16>, vector<4x128xbf16>, vector<256x128xf32> -> vector<256x128xf32>
    %c0_4 = arith.constant 0 : index
    %c0_5 = arith.constant 0 : index
    %4 = vector.load %arg4[%c0_4, %c0_5] : memref<1x128xf32, #tpu.memory_space<vmem>>, vector<1x128xf32>
    %5 = vector.broadcast %4 : vector<1x128xf32> to vector<256x128xf32>
    %6 = arith.addf %3, %5 : vector<256x128xf32>
    %c0_6 = arith.constant 0 : index
    %c0_7 = arith.constant 0 : index
    %c0_8 = arith.constant 0 : index
    %7 = vector.load %arg5[%c0_6, %c0_7, %c0_8] : memref<1x256x128xf32, #tpu.memory_space<vmem>>, vector<1x256x128xf32>
    %8 = vector.shape_cast %7 : vector<1x256x128xf32> to vector<256x128xf32>
    %9 = vector.shape_cast %6 : vector<256x128xf32> to vector<1x256x128xf32>
    tpu.vector_store %arg5[%c0_6, %c0_7, %c0_8], %9 {strides = array<i32>} : memref<1x256x128xf32, #tpu.memory_space<vmem>>, vector<1x256x128xf32>,
    return
  }
  func.func @transform_0(%arg0: i32, %arg1: i32) -> (i32, i32, i32) {
    %c0_i32 = arith.constant 0 : i32
    %c0_i32_0 = arith.constant 0 : i32
    return %arg0, %arg1, %c0_i32 : i32, i32, i32
  }
  func.func @transform_1(%arg0: i32, %arg1: i32) -> (i32, i32) {
    %c0_i32 = arith.constant 0 : i32
    %c0_i32_0 = arith.constant 0 : i32
    %c0_i32_1 = arith.constant 0 : i32
    return %c0_i32, %c0_i32_0 : i32, i32
  }
  func.func @transform_2(%arg0: i32, %arg1: i32) -> (i32, i32) {
    %c0_i32 = arith.constant 0 : i32
    %c0_i32_0 = arith.constant 0 : i32
    %c0_i32_1 = arith.constant 0 : i32
    return %c0_i32, %c0_i32_0 : i32, i32
  }
  func.func @transform_3(%arg0: i32, %arg1: i32) -> (i32, i32, i32) {
    %c0_i32 = arith.constant 0 : i32
    %c0_i32_0 = arith.constant 0 : i32
    return %arg0, %arg1, %c0_i32 : i32, i32, i32
  }
}

</mosaic_0001>

<llo_original>
// kernel: tpu_custom_call.1
$region0: #{tpu_custom_call.1}
  #allocation0 [shape = 'u32[]', space=smem, size = 0x4, offset = 0x4, fixed_abs, tag = 'smem constant byte address 0x4 - core index']
  #allocation1 [shape = 'u32[72,128]{1,0:T(1,128)}', space=vmem, size = 0x9000, scoped, tag = 'internal scratch']
  %s0 = inlined_call_operand.vmem [shape: bf16[2,256,4], index: 0, kind: input, shape index: {}]
  %s1 = inlined_call_operand.vmem [shape: bf16[4,128], index: 1, kind: input, shape index: {}]
  %s2 = inlined_call_operand.vmem [shape: f32[1,128], index: 2, kind: input, shape index: {}]
  %s3 = inlined_call_operand.hbm [shape: f32[2,256,128], index: 3, kind: output, shape index: {}]
  %s4 = sld [smem:[#allocation0]]
  $region45: #{tpu_custom_call.1} parent=0
    _
  %s6 = ssub.s32 1, %s4
  %s7 = scalar_select 0, %s6, %s4
  $region1: #{tpu_custom_call.1} parent=0
    #allocation2 [shape = 'u8[262144]{0}', space=vmem, size = 0x40000, scoped, tag = 'output window, operand 0']
    #allocation3 [shape = 's32[2]{0}', space=sflag, size = 0x8, scoped, tag = 'scoped memory for tpu_custom_call.1']
    %8 = vsyncpa [#allocation3], 0
    %s9 = scalar_lea.sflag [#allocation3], 1
    %10 = vsyncpa %s9, 0
    loop: start=0, step=1, limit=4
    $region2: #{tpu_custom_call.1} parent=1 // loop_pre_header
      _
    $region3: #{tpu_custom_call.1} parent=1 // loop_header
      %s12 = sphi 0, %s16
      %p13 = scmp.ge.s32.totalorder %s12, 4
      %s19 = sphi 0, %s31
      %s20 = sphi 0, %s27
      %s21 = sphi 0, %s19
      %s22 = sphi 0, %s20
      %s23 = sphi 0, %s21
      %s24 = sphi 0, %s22
      %s36 = sphi 0, %s38
      %s39 = sphi 0, %s36
      %s40 = sphi 0, %s39
      %s56 = sphi 0, %s40
      %s60 = sphi 0, %s60
      %s62 = sphi 0, %s60
      %s63 = sphi 0, %s62
      %s77 = sphi 0, %s63
      %s81 = sphi 0, %s81
      %s83 = sphi 0, %s81
      %s84 = sphi 0, %s83
      %s98 = sphi 0, %s84
      %s106 = sphi 0, %s108
      %s109 = sphi 0, %s106
      %s110 = sphi 0, %s109
      %s126 = sphi 0, %s110
    $region4: #{tpu_custom_call.1} parent=1 // loop_header_branch
      %15 = sbr.rel (%p13) target = $region8
    $region5: #{tpu_custom_call.1} parent=1 // loop_body
      %s17 = ssub.s32 %s12, 1
      %s18 = ssub.s32 %s12, 2
      %s25 = sadd.s32 1, %s20
      %p26 = scmp.ge.s32.totalorder %s25, 1
      %s27 = scalar_select %p26, 0, %s25
      %s28 = sadd.s32 1, %s19
      %s29 = scalar_select %p26, %s28, %s19
      %p30 = scmp.ge.s32.totalorder %s29, 2
      %s31 = scalar_select %p30, 0, %s29
      %s32 = ssub.s32 %s19, %s31
      %s33 = ssub.s32 %s20, %s27
      %s34 = sor.u32 %s32, %s33
      %p35 = scmp.eq.s32.totalorder %s34, 0
      %s37 = sadd.s32 %s36, 1
      %s38 = scalar_select %p35, %s36, %s37
      %p41 = pneg %p35
      %p42 = scmp.eq.s32.totalorder %s12, 1
      %p43 = por %p41, %p42
      %p44 = scmp.ne.s32.totalorder %s36, %s39
      %p45 = scmp.eq.s32.totalorder %s12, 0
      %p46 = por %p44, %p45
      %p47 = scmp.ne.s32.totalorder %s36, %s39
      %p48 = scmp.eq.s32.totalorder %s17, 1
      %p49 = por %p47, %p48
      %p50 = scmp.ne.s32.totalorder %s39, %s40
      %p51 = scmp.eq.s32.totalorder %s17, 0
      %p52 = por %p50, %p51
      %p53 = scmp.ne.s32.totalorder %s39, %s40
      %p54 = scmp.eq.s32.totalorder %s18, 1
      %p55 = por %p53, %p54
      %p57 = scmp.ne.s32.totalorder %s40, %s56
      %p58 = scmp.eq.s32.totalorder %s18, 0
      %p59 = por %p57, %p58
      %s61 = sadd.s32 %s60, 1
      %p64 = scmp.eq.s32.totalorder %s12, 1
      %p65 = scmp.ne.s32.totalorder %s60, %s62
      %p66 = scmp.eq.s32.totalorder %s12, 0
      %p67 = por %p65, %p66
      %p68 = scmp.ne.s32.totalorder %s60, %s62
      %p69 = scmp.eq.s32.totalorder %s17, 1
      %p70 = por %p68, %p69
      %p71 = scmp.ne.s32.totalorder %s62, %s63
      %p72 = scmp.eq.s32.totalorder %s17, 0
      %p73 = por %p71, %p72
      %p74 = scmp.ne.s32.totalorder %s62, %s63
      %p75 = scmp.eq.s32.totalorder %s18, 1
      %p76 = por %p74, %p75
      %p78 = scmp.ne.s32.totalorder %s63, %s77
      %p79 = scmp.eq.s32.totalorder %s18, 0
      %p80 = por %p78, %p79
      %s82 = sadd.s32 %s81, 1
      %p85 = scmp.eq.s32.totalorder %s12, 1
      %p86 = scmp.ne.s32.totalorder %s81, %s83
      %p87 = scmp.eq.s32.totalorder %s12, 0
      %p88 = por %p86, %p87
      %p89 = scmp.ne.s32.totalorder %s81, %s83
      %p90 = scmp.eq.s32.totalorder %s17, 1
      %p91 = por %p89, %p90
      %p92 = scmp.ne.s32.totalorder %s83, %s84
      %p93 = scmp.eq.s32.totalorder %s17, 0
      %p94 = por %p92, %p93
      %p95 = scmp.ne.s32.totalorder %s83, %s84
      %p96 = scmp.eq.s32.totalorder %s18, 1
      %p97 = por %p95, %p96
      %p99 = scmp.ne.s32.totalorder %s84, %s98
      %p100 = scmp.eq.s32.totalorder %s18, 0
      %p101 = por %p99, %p100
      %s102 = ssub.s32 %s19, %s31
      %s103 = ssub.s32 %s20, %s27
      %s104 = sor.u32 %s102, %s103
      %p105 = scmp.eq.s32.totalorder %s104, 0
      %s107 = sadd.s32 %s106, 1
      %s108 = scalar_select %p105, %s106, %s107
      %p111 = pneg %p105
      %p112 = scmp.eq.s32.totalorder %s12, 1
      %p113 = por %p111, %p112
      %p114 = scmp.ne.s32.totalorder %s106, %s109
      %p115 = scmp.eq.s32.totalorder %s12, 0
      %p116 = por %p114, %p115
      %p117 = scmp.ne.s32.totalorder %s106, %s109
      %p118 = scmp.eq.s32.totalorder %s17, 1
      %p119 = por %p117, %p118
      %p120 = scmp.ne.s32.totalorder %s109, %s110
      %p121 = scmp.eq.s32.totalorder %s17, 0
      %p122 = por %p120, %p121
      %p123 = scmp.ne.s32.totalorder %s109, %s110
      %p124 = scmp.eq.s32.totalorder %s18, 1
      %p125 = por %p123, %p124
      %p127 = scmp.ne.s32.totalorder %s110, %s126
      %p128 = scmp.eq.s32.totalorder %s18, 0
      %p129 = por %p127, %p128
      %p130 = scmp.le.s32.totalorder 1, %s12
      %p131 = scmp.lt.s32.totalorder %s12, 3
      %p132 = pnand %p130, %p131
      %p133 = pneg %p132
      // Predicated region
      $region9: #{tpu_custom_call.1} parent=5 // pred_check
        _
      $region10: #{tpu_custom_call.1} parent=5 // pred_check_branch
        %135 = sbr.rel (%p132) target = $region12
      $region11: #{tpu_custom_call.1} parent=5 // pred_region
        %s136 = ssub.s32 %s12, 1
        // Predicated region
        $region13: #{tpu_custom_call.1} parent=11 // pred_check
          %p137 = pneg %p73
        $region14: #{tpu_custom_call.1} parent=11 // pred_check_branch
          %139 = sbr.rel (%p137) target = $region16
        $region15: #{tpu_custom_call.1} parent=11 // pred_region
          _
        $region16: #{tpu_custom_call.1} parent=11 // pred_fallthru
          _
        // Predicated region
        $region17: #{tpu_custom_call.1} parent=11 // pred_check
          %p140 = pneg %p94
        $region18: #{tpu_custom_call.1} parent=11 // pred_check_branch
          %142 = sbr.rel (%p140) target = $region20
        $region19: #{tpu_custom_call.1} parent=11 // pred_region
          _
        $region20: #{tpu_custom_call.1} parent=11 // pred_fallthru
          _
      $region12: #{tpu_custom_call.1} parent=5 // pred_fallthru
        _
      %p143 = scmp.lt.s32.totalorder %s12, 2
      // Predicated region
      $region21: #{tpu_custom_call.1} parent=5 // pred_check
        %p144 = pneg %p143
      $region22: #{tpu_custom_call.1} parent=5 // pred_check_branch
        %146 = sbr.rel (%p144) target = $region24
      $region23: #{tpu_custom_call.1} parent=5 // pred_region
        // Predicated region
        $region25: #{tpu_custom_call.1} parent=23 // pred_check
          %p147 = pneg %p46
        $region26: #{tpu_custom_call.1} parent=23 // pred_check_branch
          %149 = sbr.rel (%p147) target = $region28
        $region27: #{tpu_custom_call.1} parent=23 // pred_region
          %s150 = smul.u32 32, %s20
          %p151 = scmp.lt.s32.totalorder %s19, 1
          %s152 = scalar_select %p151, %s19, 1
          %p153 = scmp.lt.s32.totalorder %s150, 31
          %s154 = scalar_select %p153, %s150, 31
          %s155 = smul.addr %s152, 32
          %s156 = sadd.s32 %s154, %s155
          %s157 = smul.addr %s156, 4
          %s158 = scalar_lea.vmem %s0, %s157
          %s159 = smul.u32 32, %s20
        $region28: #{tpu_custom_call.1} parent=23 // pred_fallthru
          _
      $region24: #{tpu_custom_call.1} parent=5 // pred_fallthru
        _
      %p160 = scmp.le.s32.totalorder 1, %s12
      %p161 = scmp.lt.s32.totalorder %s12, 3
      %p162 = pnand %p160, %p161
      %p163 = pneg %p162
      // Predicated region
      $region29: #{tpu_custom_call.1} parent=5 // pred_check
        _
      $region30: #{tpu_custom_call.1} parent=5 // pred_check_branch
        %165 = sbr.rel (%p162) target = $region32
      $region31: #{tpu_custom_call.1} parent=5 // pred_region
        %s166 = ssub.s32 %s12, 1
        %s167 = smul.u32 32, %s22
        %p168 = scmp.lt.s32.totalorder %s21, 1
        %s169 = scalar_select %p168, %s21, 1
        %p170 = scmp.lt.s32.totalorder %s167, 31
        %s171 = scalar_select %p170, %s167, 31
        %s172 = smul.addr %s169, 32
        %s173 = sadd.s32 %s171, %s172
        %s174 = smul.addr %s173, 4
        %s175 = scalar_lea.vmem %s0, %s174
        %p176 = pneg %p52
        %p177 = pneg %p49
        %p178 = pneg %p73
        %p179 = pneg %p70
        %p180 = pneg %p94
        %p181 = pneg %p91
        %p182 = pneg %p122
        %p183 = pneg %p119
        %s184 = sand.u32 %s109, 1
        %s185 = scalar_lea.sflag [#allocation3], %s184
        %s186 = sand.u32 %s109, 1
        %s187 = smul.addr %s186, 256
        %s188 = scalar_lea.vmem [#allocation2], %s187
        %s189 = smul.u32 32, %s22
        %p190 = scmp.lt.s32.totalorder %s21, 1
        %s191 = scalar_select %p190, %s21, 1
        %p192 = scmp.lt.s32.totalorder %s189, 31
        %s193 = scalar_select %p192, %s189, 31
        %s194 = smul.addr %s191, 32
        %s195 = sadd.s32 %s193, %s194
        %s196 = smul.addr %s195, 4
        %s197 = scalar_lea.vmem %s0, %s196
        %s198 = smul.u32 32, %s22
        %s199 = smul.u32 32, %s22
        %v201 = vld [vmem:[%s197] sm:$0xf]
        %v202 = vld [vmem:[%s197 + $0x4] sm:$0xf]
        %v203 = vld [vmem:[%s197 + $0x8] sm:$0xf]
        %v204 = vld [vmem:[%s197 + $0xc] sm:$0xf]
        %v205 = vld [vmem:[%s197 + $0x10] sm:$0xf]
        %v206 = vld [vmem:[%s197 + $0x14] sm:$0xf]
        %v207 = vld [vmem:[%s197 + $0x18] sm:$0xf]
        %v208 = vld [vmem:[%s197 + $0x1c] sm:$0xf]
        %v209 = vld [vmem:[%s197 + $0x20] sm:$0xf]
        %v210 = vld [vmem:[%s197 + $0x24] sm:$0xf]
        %v211 = vld [vmem:[%s197 + $0x28] sm:$0xf]
        %v212 = vld [vmem:[%s197 + $0x2c] sm:$0xf]
        %v213 = vld [vmem:[%s197 + $0x30] sm:$0xf]
        %v214 = vld [vmem:[%s197 + $0x34] sm:$0xf]
        %v215 = vld [vmem:[%s197 + $0x38] sm:$0xf]
        %v216 = vld [vmem:[%s197 + $0x3c] sm:$0xf]
        %v217 = vld [vmem:[%s197 + $0x40] sm:$0xf]
        %v218 = vld [vmem:[%s197 + $0x44] sm:$0xf]
        %v219 = vld [vmem:[%s197 + $0x48] sm:$0xf]
        %v220 = vld [vmem:[%s197 + $0x4c] sm:$0xf]
        %v221 = vld [vmem:[%s197 + $0x50] sm:$0xf]
        %v222 = vld [vmem:[%s197 + $0x54] sm:$0xf]
        %v223 = vld [vmem:[%s197 + $0x58] sm:$0xf]
        %v224 = vld [vmem:[%s197 + $0x5c] sm:$0xf]
        %v225 = vld [vmem:[%s197 + $0x60] sm:$0xf]
        %v226 = vld [vmem:[%s197 + $0x64] sm:$0xf]
        %v227 = vld [vmem:[%s197 + $0x68] sm:$0xf]
        %v228 = vld [vmem:[%s197 + $0x6c] sm:$0xf]
        %v229 = vld [vmem:[%s197 + $0x70] sm:$0xf]
        %v230 = vld [vmem:[%s197 + $0x74] sm:$0xf]
        %v231 = vld [vmem:[%s197 + $0x78] sm:$0xf]
        %v232 = vld [vmem:[%s197 + $0x7c] sm:$0xf]
        %v233 = vld [vmem:[%s1] sm:$0x3]
        %v234 = vld [vmem:[%s2] sm:$0x1]
        %v236 = vperm.slane %v234, 0
        %v270 = vunpack.c.l.b16 %v201
        %v271 = vunpack.c.l.b16 %v202
        %v272 = vunpack.c.l.b16 %v203
        %v273 = vunpack.c.l.b16 %v204
        %v274 = vunpack.c.l.b16 %v205
        %v275 = vunpack.c.l.b16 %v206
        %v276 = vunpack.c.l.b16 %v207
        %v277 = vunpack.c.l.b16 %v208
        %v278 = vunpack.c.l.b16 %v209
        %v279 = vunpack.c.l.b16 %v210
        %v280 = vunpack.c.l.b16 %v211
        %v281 = vunpack.c.l.b16 %v212
        %v282 = vunpack.c.l.b16 %v213
        %v283 = vunpack.c.l.b16 %v214
        %v284 = vunpack.c.l.b16 %v215
        %v285 = vunpack.c.l.b16 %v216
        %v286 = vunpack.c.l.b16 %v217
        %v287 = vunpack.c.l.b16 %v218
        %v288 = vunpack.c.l.b16 %v219
        %v289 = vunpack.c.l.b16 %v220
        %v290 = vunpack.c.l.b16 %v221
        %v291 = vunpack.c.l.b16 %v222
        %v292 = vunpack.c.l.b16 %v223
        %v293 = vunpack.c.l.b16 %v224
        %v294 = vunpack.c.l.b16 %v225
        %v295 = vunpack.c.l.b16 %v226
        %v296 = vunpack.c.l.b16 %v227
        %v297 = vunpack.c.l.b16 %v228
        %v298 = vunpack.c.l.b16 %v229
        %v299 = vunpack.c.l.b16 %v230
        %v300 = vunpack.c.l.b16 %v231
        %v301 = vunpack.c.l.b16 %v232
        %v302 = vpack.c.b16 %v271, %v270
        %v303 = vpack.c.b16 %v273, %v272
        %v304 = vpack.c.b16 %v275, %v274
        %v305 = vpack.c.b16 %v277, %v276
        %v306 = vpack.c.b16 %v279, %v278
        %v307 = vpack.c.b16 %v281, %v280
        %v308 = vpack.c.b16 %v283, %v282
        %v309 = vpack.c.b16 %v285, %v284
        %v310 = vpack.c.b16 %v287, %v286
        %v311 = vpack.c.b16 %v289, %v288
        %v312 = vpack.c.b16 %v291, %v290
        %v313 = vpack.c.b16 %v293, %v292
        %v314 = vpack.c.b16 %v295, %v294
        %v315 = vpack.c.b16 %v297, %v296
        %v316 = vpack.c.b16 %v299, %v298
        %v317 = vpack.c.b16 %v301, %v300
        %vm318 = vcmask 31744
        %v320 = vsel %vm318, %v302, 0
        %v323 = vsel %vm318, %v303, 0
        %v326 = vsel %vm318, %v304, 0
        %v329 = vsel %vm318, %v305, 0
        %v332 = vsel %vm318, %v306, 0
        %v335 = vsel %vm318, %v307, 0
        %v338 = vsel %vm318, %v308, 0
        %v341 = vsel %vm318, %v309, 0
        %v344 = vsel %vm318, %v310, 0
        %v347 = vsel %vm318, %v311, 0
        %v350 = vsel %vm318, %v312, 0
        %v353 = vsel %vm318, %v313, 0
        %v356 = vsel %vm318, %v314, 0
        %v359 = vsel %vm318, %v315, 0
        %v362 = vsel %vm318, %v316, 0
        %v365 = vsel %vm318, %v317, 0
        %vm367 = vcmask 1041408
        %v369 = vsel %vm367, %v233, 0
        %371 = vmatpush.bf16.msra.mxu0 0
        %372 = vmatpush.bf16.msra.mxu0 0
        %373 = vmatpush.bf16.msra.mxu0 0
        %374 = vmatpush.bf16.msra.mxu0 0
        %375 = vmatpush.bf16.msra.mxu0 0
        %376 = vmatpush.bf16.msra.mxu0 0
        %377 = vmatpush.bf16.msra.mxu0 0
        %378 = vmatpush.bf16.msra.mxu0 %v369
        %379 = vmatmul.bf16.gmra.mxu0 %v320
        %v380 = vpop.f32.mrf.mxu0
        %v381 = vadd.f32 %v236, %v380
        %v382 = vpop.f32.mrf.mxu0
        %v383 = vadd.f32 %v236, %v382
        %384 = vmatmul.bf16.gmra.mxu0 %v323
        %v385 = vpop.f32.mrf.mxu0
        %v386 = vadd.f32 %v236, %v385
        %v387 = vpop.f32.mrf.mxu0
        %v388 = vadd.f32 %v236, %v387
        %389 = vmatmul.bf16.gmra.mxu0 %v326
        %v390 = vpop.f32.mrf.mxu0
        %v391 = vadd.f32 %v236, %v390
        %v392 = vpop.f32.mrf.mxu0
        %v393 = vadd.f32 %v236, %v392
        %394 = vmatmul.bf16.gmra.mxu0 %v329
        %v395 = vpop.f32.mrf.mxu0
        %v396 = vadd.f32 %v236, %v395
        %v397 = vpop.f32.mrf.mxu0
        %v398 = vadd.f32 %v236, %v397
        %399 = vmatmul.bf16.gmra.mxu0 %v332
        %v400 = vpop.f32.mrf.mxu0
        %v401 = vadd.f32 %v236, %v400
        %v402 = vpop.f32.mrf.mxu0
        %v403 = vadd.f32 %v236, %v402
        %404 = vmatmul.bf16.gmra.mxu0 %v335
        %v405 = vpop.f32.mrf.mxu0
        %v406 = vadd.f32 %v236, %v405
        %v407 = vpop.f32.mrf.mxu0
        %v408 = vadd.f32 %v236, %v407
        %409 = vmatmul.bf16.gmra.mxu0 %v338
        %v410 = vpop.f32.mrf.mxu0
        %v411 = vadd.f32 %v236, %v410
        %v412 = vpop.f32.mrf.mxu0
        %v413 = vadd.f32 %v236, %v412
        %414 = vmatmul.bf16.gmra.mxu0 %v341
        %v415 = vpop.f32.mrf.mxu0
        %v416 = vadd.f32 %v236, %v415
        %v417 = vpop.f32.mrf.mxu0
        %v418 = vadd.f32 %v236, %v417
        %419 = vmatmul.bf16.gmra.mxu0 %v344
        %v420 = vpop.f32.mrf.mxu0
        %v421 = vadd.f32 %v236, %v420
        %v422 = vpop.f32.mrf.mxu0
        %v423 = vadd.f32 %v236, %v422
        %424 = vmatmul.bf16.gmra.mxu0 %v347
        %v425 = vpop.f32.mrf.mxu0
        %v426 = vadd.f32 %v236, %v425
        %v427 = vpop.f32.mrf.mxu0
        %v428 = vadd.f32 %v236, %v427
        %429 = vmatmul.bf16.gmra.mxu0 %v350
        %v430 = vpop.f32.mrf.mxu0
        %v431 = vadd.f32 %v236, %v430
        %v432 = vpop.f32.mrf.mxu0
        %v433 = vadd.f32 %v236, %v432
        %434 = vmatmul.bf16.gmra.mxu0 %v353
        %v435 = vpop.f32.mrf.mxu0
        %v436 = vadd.f32 %v236, %v435
        %v437 = vpop.f32.mrf.mxu0
        %v438 = vadd.f32 %v236, %v437
        %439 = vmatmul.bf16.gmra.mxu0 %v356
        %v440 = vpop.f32.mrf.mxu0
        %v441 = vadd.f32 %v236, %v440
        %v442 = vpop.f32.mrf.mxu0
        %v443 = vadd.f32 %v236, %v442
        %444 = vmatmul.bf16.gmra.mxu0 %v359
        %v445 = vpop.f32.mrf.mxu0
        %v446 = vadd.f32 %v236, %v445
        %v447 = vpop.f32.mrf.mxu0
        %v448 = vadd.f32 %v236, %v447
        %449 = vmatmul.bf16.gmra.mxu0 %v362
        %v450 = vpop.f32.mrf.mxu0
        %v451 = vadd.f32 %v236, %v450
        %v452 = vpop.f32.mrf.mxu0
        %v453 = vadd.f32 %v236, %v452
        %454 = vmatmul.bf16.gmra.mxu0 %v365
        %v455 = vpop.f32.mrf.mxu0
        %v456 = vadd.f32 %v236, %v455
        %v457 = vpop.f32.mrf.mxu0
        %v458 = vadd.f32 %v236, %v457
        %459 = vdwg.mxu0
        %460 = vst [vmem:[%s188] sm:$0xff] %v381
        %461 = vst [vmem:[%s188 + $0x8] sm:$0xff] %v383
        %462 = vst [vmem:[%s188 + $0x10] sm:$0xff] %v386
        %463 = vst [vmem:[%s188 + $0x18] sm:$0xff] %v388
        %464 = vst [vmem:[%s188 + $0x20] sm:$0xff] %v391
        %465 = vst [vmem:[%s188 + $0x28] sm:$0xff] %v393
        %466 = vst [vmem:[%s188 + $0x30] sm:$0xff] %v396
        %467 = vst [vmem:[%s188 + $0x38] sm:$0xff] %v398
        %468 = vst [vmem:[%s188 + $0x40] sm:$0xff] %v401
        %469 = vst [vmem:[%s188 + $0x48] sm:$0xff] %v403
        %470 = vst [vmem:[%s188 + $0x50] sm:$0xff] %v406
        %471 = vst [vmem:[%s188 + $0x58] sm:$0xff] %v408
        %472 = vst [vmem:[%s188 + $0x60] sm:$0xff] %v411
        %473 = vst [vmem:[%s188 + $0x68] sm:$0xff] %v413
        %474 = vst [vmem:[%s188 + $0x70] sm:$0xff] %v416
        %475 = vst [vmem:[%s188 + $0x78] sm:$0xff] %v418
        %476 = vst [vmem:[%s188 + $0x80] sm:$0xff] %v421
        %477 = vst [vmem:[%s188 + $0x88] sm:$0xff] %v423
        %478 = vst [vmem:[%s188 + $0x90] sm:$0xff] %v426
        %479 = vst [vmem:[%s188 + $0x98] sm:$0xff] %v428
        %480 = vst [vmem:[%s188 + $0xa0] sm:$0xff] %v431
        %481 = vst [vmem:[%s188 + $0xa8] sm:$0xff] %v433
        %482 = vst [vmem:[%s188 + $0xb0] sm:$0xff] %v436
        %483 = vst [vmem:[%s188 + $0xb8] sm:$0xff] %v438
        %484 = vst [vmem:[%s188 + $0xc0] sm:$0xff] %v441
        %485 = vst [vmem:[%s188 + $0xc8] sm:$0xff] %v443
        %486 = vst [vmem:[%s188 + $0xd0] sm:$0xff] %v446
        %487 = vst [vmem:[%s188 + $0xd8] sm:$0xff] %v448
        %488 = vst [vmem:[%s188 + $0xe0] sm:$0xff] %v451
        %489 = vst [vmem:[%s188 + $0xe8] sm:$0xff] %v453
        %490 = vst [vmem:[%s188 + $0xf0] sm:$0xff] %v456
        %491 = vst [vmem:[%s188 + $0xf8] sm:$0xff] %v458
        %s492 = sand.u32 %s109, 1
        %s493 = scalar_lea.sflag [#allocation3], %s492
        %s494 = sand.u32 %s109, 1
        %s495 = smul.addr %s494, 256
        %s496 = scalar_lea.vmem [#allocation2], %s495
        // Predicated region
        $region33: #{tpu_custom_call.1} parent=31 // pred_check
          %p497 = pneg %p119
        $region34: #{tpu_custom_call.1} parent=31 // pred_check_branch
          %499 = sbr.rel (%p497) target = $region36
        $region35: #{tpu_custom_call.1} parent=31 // pred_region
          %s500 = smul.u32 32, %s22
          %502 = vsyncadd %s493, 0
          %s503 = smul.addr %s21, 32
          %s504 = sadd.s32 %s500, %s503
          %s505 = smul.addr %s504, 8
          %s506 = scalar_lea.hbm %s3, %s505
          %s507 = sshll.u32 %s496, 4
          %s508 = int_to_ptr.vmem [resolvable:$true] %s507
          %s509 = sshll.u32 %s506, 4
          %s510 = int_to_ptr.hbm [resolvable:$true] %s509
          %515 = dma.vmem_to_hbm [thread:$0]  %s508, 4096, %s510, %s493, 128, 128, 8
        $region36: #{tpu_custom_call.1} parent=31 // pred_fallthru
          _
      $region32: #{tpu_custom_call.1} parent=5 // pred_fallthru
        _
      %p516 = scmp.le.s32.totalorder 2, %s12
      // Predicated region
      $region37: #{tpu_custom_call.1} parent=5 // pred_check
        %p517 = pneg %p516
      $region38: #{tpu_custom_call.1} parent=5 // pred_check_branch
        %519 = sbr.rel (%p517) target = $region40
      $region39: #{tpu_custom_call.1} parent=5 // pred_region
        %s520 = ssub.s32 %s12, 2
        // Predicated region
        $region41: #{tpu_custom_call.1} parent=39 // pred_check
          %p521 = pneg %p125
        $region42: #{tpu_custom_call.1} parent=39 // pred_check_branch
          %523 = sbr.rel (%p521) target = $region44
        $region43: #{tpu_custom_call.1} parent=39 // pred_region
          %s524 = sand.u32 %s110, 1
          %s525 = scalar_lea.sflag [#allocation3], %s524
          %s526 = sand.u32 %s110, 1
          %s527 = smul.addr %s526, 256
          %s528 = scalar_lea.vmem [#allocation2], %s527
          %530 = dma.done %s525, 4096
        $region44: #{tpu_custom_call.1} parent=39 // pred_fallthru
          _
      $region40: #{tpu_custom_call.1} parent=5 // pred_fallthru
        _
    $region6: #{tpu_custom_call.1} parent=1 // loop_footer
      %s16 = sadd.s32 1, %s12
    $region7: #{tpu_custom_call.1} parent=1 // loop_footer_branch
      %11 = sbr.rel target = $region3
    $region8: #{tpu_custom_call.1} parent=1 // loop_exit
      _
    %531 = vsyncpa [#allocation3], 1
    %s532 = scalar_lea.sflag [#allocation3], 1
    %533 = vsyncpa %s532, 1

</llo_original>
